<compile_context>
chip_gen: v7x
topology: tpu7x:2x2x1
jax: 0.10.0
libtpu: 0.0.40
codegen_flags: <defaults>
</compile_context>

<pallas_src>
import functools
import math

import jax
import jax.numpy as jnp
from jax.experimental import pallas as pl
from jax.experimental.pallas import tpu as pltpu


_INV_SQRT2 = 1.0 / math.sqrt(2.0)
_SQRT_2_OVER_PI = math.sqrt(2.0 / math.pi)


def _gelu(h, approximate):
    """GELU on an f32 array. Shared by the kernel and the pure-JAX reference."""
    if approximate:
        # tanh approximation: tanh goes to the EUP slot, few VALU ops remain.
        inner = _SQRT_2_OVER_PI * (h + 0.044715 * (h * h * h))
        return 0.5 * h * (1.0 + jnp.tanh(inner))
    # exact erf GELU == torch.nn.GELU() default
    return 0.5 * h * (1.0 + jax.lax.erf(h * jnp.float32(_INV_SQRT2)))


def _mlp_kernel(x_ref, w1_ref, b1_ref, w2_ref, b2_ref, o_ref, *,
                b_tile, c_mid_chunk, approximate):
    """Fused o = W2 @ gelu(W1 @ x + b1) + b2 for a (b_tile, C, tile_S) slab."""
    # Tiny weights: load once per grid step (already VMEM-resident).
    w1 = w1_ref[...]                              # (C_mid, C_in)
    b1 = b1_ref[...].astype(jnp.float32)          # (C_mid, 1)
    w2 = w2_ref[...]                              # (C_out, C_mid)
    b2 = b2_ref[...].astype(jnp.float32)          # (C_out, 1)
    c_mid = w1.shape[0]

    for b in range(b_tile):                       # static unroll over batch tile
        x = x_ref[b]                              # (C_in, tile_S)
        acc = None
        # Chunk C_mid so the full (C_mid, tile_S) hidden never materializes.
        for c0 in range(0, c_mid, c_mid_chunk):
            c1 = min(c0 + c_mid_chunk, c_mid)
            h = jnp.dot(w1[c0:c1, :], x, preferred_element_type=jnp.float32)
            h = h + b1[c0:c1, :]
            h = _gelu(h, approximate)
            part = jnp.dot(w2[:, c0:c1], h, preferred_element_type=jnp.float32)
            acc = part if acc is None else acc + part
        o_ref[b] = (acc + b2).astype(o_ref.dtype)


def _choose_tiles(n, s, c_in, c_out, itemsize, tile_s_target):
    """Pick (b_tile, tile_s): lane-dense spatial tile + batch blocking for small S."""
    # tile_s must be a multiple of 128 unless it spans the whole axis.
    tile_s_target = max(128, min(int(tile_s_target) // 128 * 128, 32768))
    if s <= tile_s_target:
        tile_s = s                               # whole axis as one block (legal)
        single_s_block = True
    else:
        tile_s = tile_s_target
        single_s_block = False

    b_tile = 1
    if single_s_block and n > 1:
        per_sample_bytes = (c_in + c_out) * tile_s * itemsize
        target_bytes = 2 << 20                    # ~2 MiB of x+o per grid step
        b_tile = max(1, min(n, target_bytes // max(per_sample_bytes, 1), 8))
        # keep >= 2 grid steps so both v7x TensorCores get work
        if b_tile >= n:
            b_tile = max(1, n // 2)
        while n % b_tile:                         # avoid clipped batch blocks
            b_tile -= 1
    return b_tile, tile_s


@functools.partial(jax.jit,
                   static_argnames=("b_tile", "tile_s", "c_mid_chunk", "approximate"))
def _mlp_channels_first(x3d, w1, b1, w2, b2, *, b_tile, tile_s, c_mid_chunk,
                        approximate):
    """x3d: (N, C_in, S) channels-first.  Returns (N, C_out, S)."""
    n, c_in, s = x3d.shape
    c_mid = w1.shape[0]
    c_out = w2.shape[0]

    grid = (pl.cdiv(n, b_tile), pl.cdiv(s, tile_s))

    kernel = functools.partial(_mlp_kernel, b_tile=b_tile,
                               c_mid_chunk=c_mid_chunk, approximate=approximate)

    itemsize = x3d.dtype.itemsize
    flops = 2 * n * s * (c_in * c_mid + c_mid * c_out)
    bytes_accessed = (
        n * c_in * s * itemsize          # x
        + n * c_out * s * itemsize       # y
        + w1.size * w1.dtype.itemsize + w2.size * w2.dtype.itemsize
        + b1.size * b1.dtype.itemsize + b2.size * b2.dtype.itemsize
    )

    return pl.pallas_call(
        kernel,
        out_shape=jax.ShapeDtypeStruct((n, c_out, s), x3d.dtype),
        grid_spec=pltpu.PrefetchScalarGridSpec(
            num_scalar_prefetch=0,
            grid=grid,
            in_specs=[
                # x slab: (batch tile, channels, lane-dense spatial tile)
                pl.BlockSpec((b_tile, c_in, tile_s), lambda i, j: (i, 0, j)),
                # weights/biases: whole array, constant index_map -> VMEM resident
                pl.BlockSpec((c_mid, c_in), lambda i, j: (0, 0)),
                pl.BlockSpec((c_mid, 1), lambda i, j: (0, 0)),
                pl.BlockSpec((c_out, c_mid), lambda i, j: (0, 0)),
                pl.BlockSpec((c_out, 1), lambda i, j: (0, 0)),
            ],
            out_specs=pl.BlockSpec((b_tile, c_out, tile_s), lambda i, j: (i, 0, j)),
        ),
        compiler_params=pltpu.CompilerParams(
            dimension_semantics=("parallel", "parallel"),
            vmem_limit_bytes=32 * 1024 * 1024,   # safe on v5e/v6e/v7x
        ),
        cost_estimate=pl.CostEstimate(
            flops=flops,
            transcendentals=n * s * c_mid,
            bytes_accessed=bytes_accessed,
        ),
    )(x3d, w1, b1, w2, b2)


def mlp_forward(x, params, *, tile_s_target=16384, gelu_approximate=False):
    """Equivalent of MLP.forward.

    x: (N, C_in, *spatial) -- NCL / NCHW / NCDHW, matching PyTorch.
    params: w1 (C_mid, C_in), b1 (C_mid, 1), w2 (C_out, C_mid), b2 (C_out, 1)
            (PyTorch conv weight layout with the 1x1 kernel dims squeezed).
    gelu_approximate=False matches torch.nn.GELU() (exact erf); True uses the
    tanh approximation (faster: tanh runs on the EUP).
    Returns (N, C_out, *spatial).
    """
    n = x.shape[0]
    c_in = x.shape[1]
    spatial = x.shape[2:]
    s = 1
    for d in spatial:
        s *= d

    # Collapsing trailing spatial dims is layout-preserving (no transpose/copy).
    x3d = x.reshape(n, c_in, s)

    c_mid = params["w1"].shape[0]
    c_out = params["w2"].shape[0]
    b_tile, tile_s = _choose_tiles(n, s, c_in, c_out, x.dtype.itemsize,
                                   tile_s_target)
    c_mid_chunk = min(8, c_mid)

    y3d = _mlp_channels_first(x3d, params["w1"], params["b1"],
                              params["w2"], params["b2"],
                              b_tile=b_tile, tile_s=tile_s,
                              c_mid_chunk=c_mid_chunk,
                              approximate=gelu_approximate)
    return y3d.reshape(n, c_out, *spatial)


def init_params(key, in_channels, mid_channels, out_channels, dtype=jnp.float32):
    """Deterministic init mimicking PyTorch Conv kaiming-uniform bounds."""
    k1, k2, k3, k4 = jax.random.split(key, 4)
    bound1 = 1.0 / math.sqrt(in_channels)
    bound2 = 1.0 / math.sqrt(mid_channels)
    w1 = jax.random.uniform(k1, (mid_channels, in_channels), dtype,
                            minval=-bound1, maxval=bound1)
    b1 = jax.random.uniform(k2, (mid_channels, 1), dtype,
                            minval=-bound1, maxval=bound1)
    w2 = jax.random.uniform(k3, (out_channels, mid_channels), dtype,
                            minval=-bound2, maxval=bound2)
    b2 = jax.random.uniform(k4, (out_channels, 1), dtype,
                            minval=-bound2, maxval=bound2)
    return {"w1": w1, "b1": b1, "w2": w2, "b2": b2}


def _reference(x, params, *, gelu_approximate=False):
    """Pure-JAX channels-first reference of the fused kernel."""
    n, c_in = x.shape[0], x.shape[1]
    spatial = x.shape[2:]
    x3 = x.reshape(n, c_in, -1)
    hid = jnp.einsum("oc,ncs->nos", params["w1"], x3) + params["b1"][None]
    hid = _gelu(hid.astype(jnp.float32), gelu_approximate)
    out3 = jnp.einsum("oc,ncs->nos", params["w2"], hid) + params["b2"][None]
    c_out = params["w2"].shape[0]
    return out3.reshape(n, c_out, *spatial).astype(x.dtype)


if __name__ == "__main__":
    key = jax.random.PRNGKey(0)
    kx, kp, kx2 = jax.random.split(key, 3)

    # dim=2 case: NCHW with batch=2, in_channels=4, mid=32, out=4, spatial 16x16
    in_channels, mid_channels, out_channels = 4, 32, 4
    x = jax.random.normal(kx, (2, in_channels, 16, 16), jnp.float32)
    params = init_params(kp, in_channels, mid_channels, out_channels)

    # exact-erf GELU (torch.nn.GELU() default semantics)
    y = mlp_forward(x, params)
    jax.block_until_ready(y)
    assert y.shape == (2, out_channels, 16, 16), y.shape
    assert jnp.allclose(y, _reference(x, params), atol=1e-5, rtol=1e-5)

    # tanh-approx GELU fast path (EUP tanh, fewer VALU ops)
    ya = mlp_forward(x, params, gelu_approximate=True)
    jax.block_until_ready(ya)
    assert jnp.allclose(ya, _reference(x, params, gelu_approximate=True),
                        atol=1e-4, rtol=1e-4)

    # clipped spatial edge block (S=384 with tile_S=256), single-sample batch
    x2 = jax.random.normal(kx2, (1, in_channels, 16, 24), jnp.float32)
    y2 = mlp_forward(x2, params, tile_s_target=256)
    jax.block_until_ready(y2)
    assert y2.shape == (1, out_channels, 16, 24), y2.shape
    assert jnp.allclose(y2, _reference(x2, params), atol=1e-5, rtol=1e-5)

    print("KERNEL_OK")
</pallas_src>

<mosaic_0001>
module attributes {stable_mosaic.version = 11 : i64} {
  func.func @_mlp_kernel(%arg0: i32, %arg1: i32, %arg2: memref<1x4x256xf32, #tpu.memory_space<vmem>>, %arg3: memref<32x4xf32, #tpu.memory_space<vmem>>, %arg4: memref<32x1xf32, #tpu.memory_space<vmem>>, %arg5: memref<4x32xf32, #tpu.memory_space<vmem>>, %arg6: memref<4x1xf32, #tpu.memory_space<vmem>>, %arg7: memref<1x4x256xf32, #tpu.memory_space<vmem>>) attributes {dimension_semantics = [#tpu.dimension_semantics<parallel>, #tpu.dimension_semantics<parallel>], iteration_bounds = array<i64: 2, 1>, scalar_prefetch = 0 : i64, scratch_operands = 0 : i64, tpu.core_type = #tpu.core_type<tc>, window_params = [{transform_indices = @transform_0, window_bounds = array<i64: 1, 4, 256>}, {pipeline_mode = #tpu.pipeline_mode<synchronous>, transform_indices = @transform_1, window_bounds = array<i64: 32, 4>}, {pipeline_mode = #tpu.pipeline_mode<synchronous>, transform_indices = @transform_2, window_bounds = array<i64: 32, 1>}, {pipeline_mode = #tpu.pipeline_mode<synchronous>, transform_indices = @transform_3, window_bounds = array<i64: 4, 32>}, {pipeline_mode = #tpu.pipeline_mode<synchronous>, transform_indices = @transform_4, window_bounds = array<i64: 4, 1>}, {transform_indices = @transform_5, window_bounds = array<i64: 1, 4, 256>}]} {
    %c0 = arith.constant 0 : index
    %c0_0 = arith.constant 0 : index
    %0 = vector.load %arg3[%c0, %c0_0] : memref<32x4xf32, #tpu.memory_space<vmem>>, vector<32x4xf32>
    %c0_1 = arith.constant 0 : index
    %c0_2 = arith.constant 0 : index
    %1 = vector.load %arg4[%c0_1, %c0_2] : memref<32x1xf32, #tpu.memory_space<vmem>>, vector<32x1xf32>
    %c0_3 = arith.constant 0 : index
    %c0_4 = arith.constant 0 : index
    %2 = vector.load %arg5[%c0_3, %c0_4] : memref<4x32xf32, #tpu.memory_space<vmem>>, vector<4x32xf32>
    %c0_5 = arith.constant 0 : index
    %c0_6 = arith.constant 0 : index
    %3 = vector.load %arg6[%c0_5, %c0_6] : memref<4x1xf32, #tpu.memory_space<vmem>>, vector<4x1xf32>
    %c0_7 = arith.constant 0 : index
    %c0_8 = arith.constant 0 : index
    %c0_9 = arith.constant 0 : index
    %4 = vector.load %arg2[%c0_7, %c0_8, %c0_9] : memref<1x4x256xf32, #tpu.memory_space<vmem>>, vector<1x4x256xf32>
    %5 = vector.shape_cast %4 : vector<1x4x256xf32> to vector<4x256xf32>
    %6 = vector.extract_strided_slice %0 {offsets = [0, 0], sizes = [8, 4], strides = [1, 1]} : vector<32x4xf32> to vector<8x4xf32>
    %cst = arith.constant dense<0.000000e+00> : vector<8x256xf32>
    %7 = tpu.matmul %6, %5, %cst {dimension_numbers = #tpu.dot_dimension_numbers<[1], [0], [0], [1], [0, 0, 1, 1], [], []>} : vector<8x4xf32>, vector<4x256xf32>, vector<8x256xf32> -> vector<8x256xf32>
    %8 = vector.extract_strided_slice %1 {offsets = [0, 0], sizes = [8, 1], strides = [1, 1]} : vector<32x1xf32> to vector<8x1xf32>
    %9 = vector.broadcast %8 : vector<8x1xf32> to vector<8x256xf32>
    %10 = arith.addf %7, %9 : vector<8x256xf32>
    %cst_10 = arith.constant 5.000000e-01 : f32
    %11 = vector.broadcast %cst_10 : f32 to vector<8x256xf32>
    %12 = arith.mulf %11, %10 : vector<8x256xf32>
    %cst_11 = arith.constant 0.707106769 : f32
    %13 = vector.broadcast %cst_11 : f32 to vector<8x256xf32>
    %14 = arith.mulf %10, %13 : vector<8x256xf32>
    %15 = math.erf %14 : vector<8x256xf32>
    %cst_12 = arith.constant 1.000000e+00 : f32
    %16 = vector.broadcast %cst_12 : f32 to vector<8x256xf32>
    %17 = arith.addf %16, %15 : vector<8x256xf32>
    %18 = arith.mulf %12, %17 : vector<8x256xf32>
    %19 = vector.extract_strided_slice %2 {offsets = [0, 0], sizes = [4, 8], strides = [1, 1]} : vector<4x32xf32> to vector<4x8xf32>
    %cst_13 = arith.constant dense<0.000000e+00> : vector<4x256xf32>
    %20 = tpu.matmul %19, %18, %cst_13 {dimension_numbers = #tpu.dot_dimension_numbers<[1], [0], [0], [1], [0, 0, 1, 1], [], []>} : vector<4x8xf32>, vector<8x256xf32>, vector<4x256xf32> -> vector<4x256xf32>
    %21 = vector.extract_strided_slice %0 {offsets = [8, 0], sizes = [8, 4], strides = [1, 1]} : vector<32x4xf32> to vector<8x4xf32>
    %cst_14 = arith.constant dense<0.000000e+00> : vector<8x256xf32>
    %22 = tpu.matmul %21, %5, %cst_14 {dimension_numbers = #tpu.dot_dimension_numbers<[1], [0], [0], [1], [0, 0, 1, 1], [], []>} : vector<8x4xf32>, vector<4x256xf32>, vector<8x256xf32> -> vector<8x256xf32>
    %23 = vector.extract_strided_slice %1 {offsets = [8, 0], sizes = [8, 1], strides = [1, 1]} : vector<32x1xf32> to vector<8x1xf32>
    %24 = vector.broadcast %23 : vector<8x1xf32> to vector<8x256xf32>
    %25 = arith.addf %22, %24 : vector<8x256xf32>
    %cst_15 = arith.constant 5.000000e-01 : f32
    %26 = vector.broadcast %cst_15 : f32 to vector<8x256xf32>
    %27 = arith.mulf %26, %25 : vector<8x256xf32>
    %cst_16 = arith.constant 0.707106769 : f32
    %28 = vector.broadcast %cst_16 : f32 to vector<8x256xf32>
    %29 = arith.mulf %25, %28 : vector<8x256xf32>
    %30 = math.erf %29 : vector<8x256xf32>
    %cst_17 = arith.constant 1.000000e+00 : f32
    %31 = vector.broadcast %cst_17 : f32 to vector<8x256xf32>
    %32 = arith.addf %31, %30 : vector<8x256xf32>
    %33 = arith.mulf %27, %32 : vector<8x256xf32>
    %34 = vector.extract_strided_slice %2 {offsets = [0, 8], sizes = [4, 8], strides = [1, 1]} : vector<4x32xf32> to vector<4x8xf32>
    %cst_18 = arith.constant dense<0.000000e+00> : vector<4x256xf32>
    %35 = tpu.matmul %34, %33, %cst_18 {dimension_numbers = #tpu.dot_dimension_numbers<[1], [0], [0], [1], [0, 0, 1, 1], [], []>} : vector<4x8xf32>, vector<8x256xf32>, vector<4x256xf32> -> vector<4x256xf32>
    %36 = arith.addf %20, %35 : vector<4x256xf32>
    %37 = vector.extract_strided_slice %0 {offsets = [16, 0], sizes = [8, 4], strides = [1, 1]} : vector<32x4xf32> to vector<8x4xf32>
    %cst_19 = arith.constant dense<0.000000e+00> : vector<8x256xf32>
    %38 = tpu.matmul %37, %5, %cst_19 {dimension_numbers = #tpu.dot_dimension_numbers<[1], [0], [0], [1], [0, 0, 1, 1], [], []>} : vector<8x4xf32>, vector<4x256xf32>, vector<8x256xf32> -> vector<8x256xf32>
    %39 = vector.extract_strided_slice %1 {offsets = [16, 0], sizes = [8, 1], strides = [1, 1]} : vector<32x1xf32> to vector<8x1xf32>
    %40 = vector.broadcast %39 : vector<8x1xf32> to vector<8x256xf32>
    %41 = arith.addf %38, %40 : vector<8x256xf32>
    %cst_20 = arith.constant 5.000000e-01 : f32
    %42 = vector.broadcast %cst_20 : f32 to vector<8x256xf32>
    %43 = arith.mulf %42, %41 : vector<8x256xf32>
    %cst_21 = arith.constant 0.707106769 : f32
    %44 = vector.broadcast %cst_21 : f32 to vector<8x256xf32>
    %45 = arith.mulf %41, %44 : vector<8x256xf32>
    %46 = math.erf %45 : vector<8x256xf32>
    %cst_22 = arith.constant 1.000000e+00 : f32
    %47 = vector.broadcast %cst_22 : f32 to vector<8x256xf32>
    %48 = arith.addf %47, %46 : vector<8x256xf32>
    %49 = arith.mulf %43, %48 : vector<8x256xf32>
    %50 = vector.extract_strided_slice %2 {offsets = [0, 16], sizes = [4, 8], strides = [1, 1]} : vector<4x32xf32> to vector<4x8xf32>
    %cst_23 = arith.constant dense<0.000000e+00> : vector<4x256xf32>
    %51 = tpu.matmul %50, %49, %cst_23 {dimension_numbers = #tpu.dot_dimension_numbers<[1], [0], [0], [1], [0, 0, 1, 1], [], []>} : vector<4x8xf32>, vector<8x256xf32>, vector<4x256xf32> -> vector<4x256xf32>
    %52 = arith.addf %36, %51 : vector<4x256xf32>
    %53 = vector.extract_strided_slice %0 {offsets = [24, 0], sizes = [8, 4], strides = [1, 1]} : vector<32x4xf32> to vector<8x4xf32>
    %cst_24 = arith.constant dense<0.000000e+00> : vector<8x256xf32>
    %54 = tpu.matmul %53, %5, %cst_24 {dimension_numbers = #tpu.dot_dimension_numbers<[1], [0], [0], [1], [0, 0, 1, 1], [], []>} : vector<8x4xf32>, vector<4x256xf32>, vector<8x256xf32> -> vector<8x256xf32>
    %55 = vector.extract_strided_slice %1 {offsets = [24, 0], sizes = [8, 1], strides = [1, 1]} : vector<32x1xf32> to vector<8x1xf32>
    %56 = vector.broadcast %55 : vector<8x1xf32> to vector<8x256xf32>
    %57 = arith.addf %54, %56 : vector<8x256xf32>
    %cst_25 = arith.constant 5.000000e-01 : f32
    %58 = vector.broadcast %cst_25 : f32 to vector<8x256xf32>
    %59 = arith.mulf %58, %57 : vector<8x256xf32>
    %cst_26 = arith.constant 0.707106769 : f32
    %60 = vector.broadcast %cst_26 : f32 to vector<8x256xf32>
    %61 = arith.mulf %57, %60 : vector<8x256xf32>
    %62 = math.erf %61 : vector<8x256xf32>
    %cst_27 = arith.constant 1.000000e+00 : f32
    %63 = vector.broadcast %cst_27 : f32 to vector<8x256xf32>
    %64 = arith.addf %63, %62 : vector<8x256xf32>
    %65 = arith.mulf %59, %64 : vector<8x256xf32>
    %66 = vector.extract_strided_slice %2 {offsets = [0, 24], sizes = [4, 8], strides = [1, 1]} : vector<4x32xf32> to vector<4x8xf32>
    %cst_28 = arith.constant dense<0.000000e+00> : vector<4x256xf32>
    %67 = tpu.matmul %66, %65, %cst_28 {dimension_numbers = #tpu.dot_dimension_numbers<[1], [0], [0], [1], [0, 0, 1, 1], [], []>} : vector<4x8xf32>, vector<8x256xf32>, vector<4x256xf32> -> vector<4x256xf32>
    %68 = arith.addf %52, %67 : vector<4x256xf32>
    %69 = vector.broadcast %3 : vector<4x1xf32> to vector<4x256xf32>
    %70 = arith.addf %68, %69 : vector<4x256xf32>
    %c0_29 = arith.constant 0 : index
    %c0_30 = arith.constant 0 : index
    %c0_31 = arith.constant 0 : index
    %71 = vector.load %arg7[%c0_29, %c0_30, %c0_31] : memref<1x4x256xf32, #tpu.memory_space<vmem>>, vector<1x4x256xf32>
    %72 = vector.shape_cast %71 : vector<1x4x256xf32> to vector<4x256xf32>
    %73 = vector.shape_cast %70 : vector<4x256xf32> to vector<1x4x256xf32>
    tpu.vector_store %arg7[%c0_29, %c0_30, %c0_31], %73 {strides = array<i32>} : memref<1x4x256xf32, #tpu.memory_space<vmem>>, vector<1x4x256xf32>,
    return
  }
  func.func @transform_0(%arg0: i32, %arg1: i32) -> (i32, i32, i32) {
    %c0_i32 = arith.constant 0 : i32
    %c0_i32_0 = arith.constant 0 : i32
    return %arg0, %c0_i32, %arg1 : i32, i32, i32
  }
  func.func @transform_1(%arg0: i32, %arg1: i32) -> (i32, i32) {
    %c0_i32 = arith.constant 0 : i32
    %c0_i32_0 = arith.constant 0 : i32
    %c0_i32_1 = arith.constant 0 : i32
    return %c0_i32, %c0_i32_0 : i32, i32
  }
  func.func @transform_2(%arg0: i32, %arg1: i32) -> (i32, i32) {
    %c0_i32 = arith.constant 0 : i32
    %c0_i32_0 = arith.constant 0 : i32
    %c0_i32_1 = arith.constant 0 : i32
    return %c0_i32, %c0_i32_0 : i32, i32
  }
  func.func @transform_3(%arg0: i32, %arg1: i32) -> (i32, i32) {
    %c0_i32 = arith.constant 0 : i32
    %c0_i32_0 = arith.constant 0 : i32
    %c0_i32_1 = arith.constant 0 : i32
    return %c0_i32, %c0_i32_0 : i32, i32
  }
  func.func @transform_4(%arg0: i32, %arg1: i32) -> (i32, i32) {
    %c0_i32 = arith.constant 0 : i32
    %c0_i32_0 = arith.constant 0 : i32
    %c0_i32_1 = arith.constant 0 : i32
    return %c0_i32, %c0_i32_0 : i32, i32
  }
  func.func @transform_5(%arg0: i32, %arg1: i32) -> (i32, i32, i32) {
    %c0_i32 = arith.constant 0 : i32
    %c0_i32_0 = arith.constant 0 : i32
    return %arg0, %c0_i32, %arg1 : i32, i32, i32
  }
}

</mosaic_0001>

<llo_original>
// kernel: _mlp_channels_first.1
$region0: #{_mlp_channels_first.1}
  #allocation0 [shape = 'u32[]', space=smem, size = 0x4, offset = 0x4, fixed_abs, tag = 'smem constant byte address 0x4 - core index']
  #allocation1 [shape = 'u32[144,128]{1,0:T(1,128)}', space=vmem, size = 0x12000, scoped, tag = 'internal scratch']
  %s0 = inlined_call_operand.vmem [shape: f32[2,4,256], index: 0, kind: input, shape index: {}]
  %s1 = inlined_call_operand.vmem [shape: f32[32,4], index: 1, kind: input, shape index: {}]
  %s2 = inlined_call_operand.vmem [shape: f32[32,1], index: 2, kind: input, shape index: {}]
  %s3 = inlined_call_operand.vmem [shape: f32[4,32], index: 3, kind: input, shape index: {}]
  %s4 = inlined_call_operand.vmem [shape: f32[4,1], index: 4, kind: input, shape index: {}]
  %s5 = inlined_call_operand.hbm [shape: f32[2,4,256], index: 5, kind: output, shape index: {}]
  %s6 = sld [smem:[#allocation0]]
  $region53: #{_mlp_channels_first.1} parent=0
    _
  %s8 = ssub.s32 1, %s6
  %s9 = scalar_select 0, %s8, %s6
  $region1: #{_mlp_channels_first.1} parent=0
    #allocation2 [shape = 'u8[8192]{0}', space=vmem, size = 0x2000, scoped, tag = 'output window, operand 0']
    #allocation3 [shape = 's32[2]{0}', space=sflag, size = 0x8, scoped, tag = 'scoped memory for _mlp_channels_first.1']
    %10 = vsyncpa [#allocation3], 0
    %s11 = scalar_lea.sflag [#allocation3], 1
    %12 = vsyncpa %s11, 0
    loop: start=0, step=1, limit=4
    $region2: #{_mlp_channels_first.1} parent=1 // loop_pre_header
      _
    $region3: #{_mlp_channels_first.1} parent=1 // loop_header
      %s14 = sphi 0, %s18
      %p15 = scmp.ge.s32.totalorder %s14, 4
      %s21 = sphi 0, %s33
      %s22 = sphi 0, %s29
      %s23 = sphi 0, %s21
      %s24 = sphi 0, %s22
      %s25 = sphi 0, %s23
      %s26 = sphi 0, %s24
      %s38 = sphi 0, %s40
      %s41 = sphi 0, %s38
      %s42 = sphi 0, %s41
      %s58 = sphi 0, %s42
      %s62 = sphi 0, %s62
      %s64 = sphi 0, %s62
      %s65 = sphi 0, %s64
      %s79 = sphi 0, %s65
      %s83 = sphi 0, %s83
      %s85 = sphi 0, %s83
      %s86 = sphi 0, %s85
      %s100 = sphi 0, %s86
      %s104 = sphi 0, %s104
      %s106 = sphi 0, %s104
      %s107 = sphi 0, %s106
      %s121 = sphi 0, %s107
      %s125 = sphi 0, %s125
      %s127 = sphi 0, %s125
      %s128 = sphi 0, %s127
      %s142 = sphi 0, %s128
      %s150 = sphi 0, %s152
      %s153 = sphi 0, %s150
      %s154 = sphi 0, %s153
      %s170 = sphi 0, %s154
    $region4: #{_mlp_channels_first.1} parent=1 // loop_header_branch
      %17 = sbr.rel (%p15) target = $region8
    $region5: #{_mlp_channels_first.1} parent=1 // loop_body
      %s19 = ssub.s32 %s14, 1
      %s20 = ssub.s32 %s14, 2
      %s27 = sadd.s32 1, %s22
      %p28 = scmp.ge.s32.totalorder %s27, 1
      %s29 = scalar_select %p28, 0, %s27
      %s30 = sadd.s32 1, %s21
      %s31 = scalar_select %p28, %s30, %s21
      %p32 = scmp.ge.s32.totalorder %s31, 2
      %s33 = scalar_select %p32, 0, %s31
      %s34 = ssub.s32 %s21, %s33
      %s35 = ssub.s32 %s22, %s29
      %s36 = sor.u32 %s34, %s35
      %p37 = scmp.eq.s32.totalorder %s36, 0
      %s39 = sadd.s32 %s38, 1
      %s40 = scalar_select %p37, %s38, %s39
      %p43 = pneg %p37
      %p44 = scmp.eq.s32.totalorder %s14, 1
      %p45 = por %p43, %p44
      %p46 = scmp.ne.s32.totalorder %s38, %s41
      %p47 = scmp.eq.s32.totalorder %s14, 0
      %p48 = por %p46, %p47
      %p49 = scmp.ne.s32.totalorder %s38, %s41
      %p50 = scmp.eq.s32.totalorder %s19, 1
      %p51 = por %p49, %p50
      %p52 = scmp.ne.s32.totalorder %s41, %s42
      %p53 = scmp.eq.s32.totalorder %s19, 0
      %p54 = por %p52, %p53
      %p55 = scmp.ne.s32.totalorder %s41, %s42
      %p56 = scmp.eq.s32.totalorder %s20, 1
      %p57 = por %p55, %p56
      %p59 = scmp.ne.s32.totalorder %s42, %s58
      %p60 = scmp.eq.s32.totalorder %s20, 0
      %p61 = por %p59, %p60
      %s63 = sadd.s32 %s62, 1
      %p66 = scmp.eq.s32.totalorder %s14, 1
      %p67 = scmp.ne.s32.totalorder %s62, %s64
      %p68 = scmp.eq.s32.totalorder %s14, 0
      %p69 = por %p67, %p68
      %p70 = scmp.ne.s32.totalorder %s62, %s64
      %p71 = scmp.eq.s32.totalorder %s19, 1
      %p72 = por %p70, %p71
      %p73 = scmp.ne.s32.totalorder %s64, %s65
      %p74 = scmp.eq.s32.totalorder %s19, 0
      %p75 = por %p73, %p74
      %p76 = scmp.ne.s32.totalorder %s64, %s65
      %p77 = scmp.eq.s32.totalorder %s20, 1
      %p78 = por %p76, %p77
      %p80 = scmp.ne.s32.totalorder %s65, %s79
      %p81 = scmp.eq.s32.totalorder %s20, 0
      %p82 = por %p80, %p81
      %s84 = sadd.s32 %s83, 1
      %p87 = scmp.eq.s32.totalorder %s14, 1
      %p88 = scmp.ne.s32.totalorder %s83, %s85
      %p89 = scmp.eq.s32.totalorder %s14, 0
      %p90 = por %p88, %p89
      %p91 = scmp.ne.s32.totalorder %s83, %s85
      %p92 = scmp.eq.s32.totalorder %s19, 1
      %p93 = por %p91, %p92
      %p94 = scmp.ne.s32.totalorder %s85, %s86
      %p95 = scmp.eq.s32.totalorder %s19, 0
      %p96 = por %p94, %p95
      %p97 = scmp.ne.s32.totalorder %s85, %s86
      %p98 = scmp.eq.s32.totalorder %s20, 1
      %p99 = por %p97, %p98
      %p101 = scmp.ne.s32.totalorder %s86, %s100
      %p102 = scmp.eq.s32.totalorder %s20, 0
      %p103 = por %p101, %p102
      %s105 = sadd.s32 %s104, 1
      %p108 = scmp.eq.s32.totalorder %s14, 1
      %p109 = scmp.ne.s32.totalorder %s104, %s106
      %p110 = scmp.eq.s32.totalorder %s14, 0
      %p111 = por %p109, %p110
      %p112 = scmp.ne.s32.totalorder %s104, %s106
      %p113 = scmp.eq.s32.totalorder %s19, 1
      %p114 = por %p112, %p113
      %p115 = scmp.ne.s32.totalorder %s106, %s107
      %p116 = scmp.eq.s32.totalorder %s19, 0
      %p117 = por %p115, %p116
      %p118 = scmp.ne.s32.totalorder %s106, %s107
      %p119 = scmp.eq.s32.totalorder %s20, 1
      %p120 = por %p118, %p119
      %p122 = scmp.ne.s32.totalorder %s107, %s121
      %p123 = scmp.eq.s32.totalorder %s20, 0
      %p124 = por %p122, %p123
      %s126 = sadd.s32 %s125, 1
      %p129 = scmp.eq.s32.totalorder %s14, 1
      %p130 = scmp.ne.s32.totalorder %s125, %s127
      %p131 = scmp.eq.s32.totalorder %s14, 0
      %p132 = por %p130, %p131
      %p133 = scmp.ne.s32.totalorder %s125, %s127
      %p134 = scmp.eq.s32.totalorder %s19, 1
      %p135 = por %p133, %p134
      %p136 = scmp.ne.s32.totalorder %s127, %s128
      %p137 = scmp.eq.s32.totalorder %s19, 0
      %p138 = por %p136, %p137
      %p139 = scmp.ne.s32.totalorder %s127, %s128
      %p140 = scmp.eq.s32.totalorder %s20, 1
      %p141 = por %p139, %p140
      %p143 = scmp.ne.s32.totalorder %s128, %s142
      %p144 = scmp.eq.s32.totalorder %s20, 0
      %p145 = por %p143, %p144
      %s146 = ssub.s32 %s21, %s33
      %s147 = ssub.s32 %s22, %s29
      %s148 = sor.u32 %s146, %s147
      %p149 = scmp.eq.s32.totalorder %s148, 0
      %s151 = sadd.s32 %s150, 1
      %s152 = scalar_select %p149, %s150, %s151
      %p155 = pneg %p149
      %p156 = scmp.eq.s32.totalorder %s14, 1
      %p157 = por %p155, %p156
      %p158 = scmp.ne.s32.totalorder %s150, %s153
      %p159 = scmp.eq.s32.totalorder %s14, 0
      %p160 = por %p158, %p159
      %p161 = scmp.ne.s32.totalorder %s150, %s153
      %p162 = scmp.eq.s32.totalorder %s19, 1
      %p163 = por %p161, %p162
      %p164 = scmp.ne.s32.totalorder %s153, %s154
      %p165 = scmp.eq.s32.totalorder %s19, 0
      %p166 = por %p164, %p165
      %p167 = scmp.ne.s32.totalorder %s153, %s154
      %p168 = scmp.eq.s32.totalorder %s20, 1
      %p169 = por %p167, %p168
      %p171 = scmp.ne.s32.totalorder %s154, %s170
      %p172 = scmp.eq.s32.totalorder %s20, 0
      %p173 = por %p171, %p172
      %p174 = scmp.le.s32.totalorder 1, %s14
      %p175 = scmp.lt.s32.totalorder %s14, 3
      %p176 = pnand %p174, %p175
      %p177 = pneg %p176
      // Predicated region
      $region9: #{_mlp_channels_first.1} parent=5 // pred_check
        _
      $region10: #{_mlp_channels_first.1} parent=5 // pred_check_branch
        %179 = sbr.rel (%p176) target = $region12
      $region11: #{_mlp_channels_first.1} parent=5 // pred_region
        %s180 = ssub.s32 %s14, 1
        // Predicated region
        $region13: #{_mlp_channels_first.1} parent=11 // pred_check
          %p181 = pneg %p75
        $region14: #{_mlp_channels_first.1} parent=11 // pred_check_branch
          %183 = sbr.rel (%p181) target = $region16
        $region15: #{_mlp_channels_first.1} parent=11 // pred_region
          _
        $region16: #{_mlp_channels_first.1} parent=11 // pred_fallthru
          _
        // Predicated region
        $region17: #{_mlp_channels_first.1} parent=11 // pred_check
          %p184 = pneg %p96
        $region18: #{_mlp_channels_first.1} parent=11 // pred_check_branch
          %186 = sbr.rel (%p184) target = $region20
        $region19: #{_mlp_channels_first.1} parent=11 // pred_region
          _
        $region20: #{_mlp_channels_first.1} parent=11 // pred_fallthru
          _
        // Predicated region
        $region21: #{_mlp_channels_first.1} parent=11 // pred_check
          %p187 = pneg %p117
        $region22: #{_mlp_channels_first.1} parent=11 // pred_check_branch
          %189 = sbr.rel (%p187) target = $region24
        $region23: #{_mlp_channels_first.1} parent=11 // pred_region
          _
        $region24: #{_mlp_channels_first.1} parent=11 // pred_fallthru
          _
        // Predicated region
        $region25: #{_mlp_channels_first.1} parent=11 // pred_check
          %p190 = pneg %p138
        $region26: #{_mlp_channels_first.1} parent=11 // pred_check_branch
          %192 = sbr.rel (%p190) target = $region28
        $region27: #{_mlp_channels_first.1} parent=11 // pred_region
          _
        $region28: #{_mlp_channels_first.1} parent=11 // pred_fallthru
          _
      $region12: #{_mlp_channels_first.1} parent=5 // pred_fallthru
        _
      %p193 = scmp.lt.s32.totalorder %s14, 2
      // Predicated region
      $region29: #{_mlp_channels_first.1} parent=5 // pred_check
        %p194 = pneg %p193
      $region30: #{_mlp_channels_first.1} parent=5 // pred_check_branch
        %196 = sbr.rel (%p194) target = $region32
      $region31: #{_mlp_channels_first.1} parent=5 // pred_region
        // Predicated region
        $region33: #{_mlp_channels_first.1} parent=31 // pred_check
          %p197 = pneg %p48
        $region34: #{_mlp_channels_first.1} parent=31 // pred_check_branch
          %199 = sbr.rel (%p197) target = $region36
        $region35: #{_mlp_channels_first.1} parent=31 // pred_region
          %s200 = smul.u32 2, %s22
          %p201 = scmp.lt.s32.totalorder %s21, 1
          %s202 = scalar_select %p201, %s21, 1
          %p203 = scmp.lt.s32.totalorder %s200, 1
          %s204 = scalar_select %p203, %s200, 1
          %s205 = smul.addr %s202, 2
          %s206 = sadd.s32 %s204, %s205
          %s207 = smul.addr %s206, 4
          %s208 = scalar_lea.vmem %s0, %s207
          %s209 = smul.u32 2, %s22
        $region36: #{_mlp_channels_first.1} parent=31 // pred_fallthru
          _
      $region32: #{_mlp_channels_first.1} parent=5 // pred_fallthru
        _
      %p210 = scmp.le.s32.totalorder 1, %s14
      %p211 = scmp.lt.s32.totalorder %s14, 3
      %p212 = pnand %p210, %p211
      %p213 = pneg %p212
      // Predicated region
      $region37: #{_mlp_channels_first.1} parent=5 // pred_check
        _
      $region38: #{_mlp_channels_first.1} parent=5 // pred_check_branch
        %215 = sbr.rel (%p212) target = $region40
      $region39: #{_mlp_channels_first.1} parent=5 // pred_region
        %s216 = ssub.s32 %s14, 1
        %s217 = smul.u32 2, %s24
        %p218 = scmp.lt.s32.totalorder %s23, 1
        %s219 = scalar_select %p218, %s23, 1
        %p220 = scmp.lt.s32.totalorder %s217, 1
        %s221 = scalar_select %p220, %s217, 1
        %s222 = smul.addr %s219, 2
        %s223 = sadd.s32 %s221, %s222
        %s224 = smul.addr %s223, 4
        %s225 = scalar_lea.vmem %s0, %s224
        %p226 = pneg %p54
        %p227 = pneg %p51
        %p228 = pneg %p75
        %p229 = pneg %p72
        %p230 = pneg %p96
        %p231 = pneg %p93
        %p232 = pneg %p117
        %p233 = pneg %p114
        %p234 = pneg %p138
        %p235 = pneg %p135
        %p236 = pneg %p166
        %p237 = pneg %p163
        %s238 = sand.u32 %s153, 1
        %s239 = scalar_lea.sflag [#allocation3], %s238
        %s240 = sand.u32 %s153, 1
        %s241 = smul.addr %s240, 8
        %s242 = scalar_lea.vmem [#allocation2], %s241
        %s243 = smul.u32 2, %s24
        %p244 = scmp.lt.s32.totalorder %s23, 1
        %s245 = scalar_select %p244, %s23, 1
        %p246 = scmp.lt.s32.totalorder %s243, 1
        %s247 = scalar_select %p246, %s243, 1
        %s248 = smul.addr %s245, 2
        %s249 = sadd.s32 %s247, %s248
        %s250 = smul.addr %s249, 4
        %s251 = scalar_lea.vmem %s0, %s250
        %s252 = smul.u32 2, %s24
        %s253 = smul.u32 2, %s24
        %v254 = vld [vmem:[%s1] sm:$0xff]
        %v255 = vld [vmem:[%s1 + $0x8] sm:$0xff]
        %v256 = vld [vmem:[%s1 + $0x10] sm:$0xff]
        %v257 = vld [vmem:[%s1 + $0x18] sm:$0xff]
        %v258 = vld [vmem:[%s2] sm:$0xff]
        %v259 = vld [vmem:[%s2 + $0x8] sm:$0xff]
        %v260 = vld [vmem:[%s2 + $0x10] sm:$0xff]
        %v261 = vld [vmem:[%s2 + $0x18] sm:$0xff]
        %v262 = vld [vmem:[%s3] sm:$0xf]
        %v263 = vld [vmem:[%s4] sm:$0xf]
        %v264 = vld [vmem:[%s251] sm:$0xff]
        %266 = vset.pattern.permute.xlu0 0
        %267 = vperm.xlu0 %266, %v258
        %v268 = vpop.permute.xlu0 %267
        %v271 = vcombine.high %v264, %v264
        %vm272 = vcmask 31744
        %v274 = vsel %vm272, %v254, 0
        %vm276 = vcmask 1043456
        %v277 = vsel %vm276, %v264, 0
        %v279 = vsel %vm276, %v271, 0
        %281 = vmatprep.subr.mxu0 %v279
        %282 = vmatpush1.msra.mxu0 %v277
        %283 = vmatprep.subr.mxu0 0.0
        %284 = vmatpush1.msra.mxu0 0.0
        %285 = vmatprep.subr.mxu0 0.0
        %286 = vmatpush1.msra.mxu0 0.0
        %287 = vmatprep.subr.mxu0 0.0
        %288 = vmatpush1.msra.mxu0 0.0
        %289 = vmatprep.subr.mxu0 0.0
        %290 = vmatpush1.msra.mxu0 0.0
        %291 = vmatprep.subr.mxu0 0.0
        %292 = vmatpush1.msra.mxu0 0.0
        %293 = vmatprep.subr.mxu0 0.0
        %294 = vmatpush1.msra.mxu0 0.0
        %295 = vmatprep.subr.mxu0 0.0
        %296 = vmatpush1.msra.mxu0 0.0
        %297 = vmatprep.subr.mxu0 0.0
        %298 = vmatpush1.msra.mxu0 0.0
        %299 = vmatprep.subr.mxu0 0.0
        %300 = vmatpush1.msra.mxu0 0.0
        %301 = vmatprep.subr.mxu0 0.0
        %302 = vmatpush1.msra.mxu0 0.0
        %303 = vmatprep.subr.mxu0 0.0
        %304 = vmatpush1.msra.mxu0 0.0
        %305 = vmatprep.subr.mxu0 0.0
        %306 = vmatpush1.msra.mxu0 0.0
        %307 = vmatprep.subr.mxu0 0.0
        %308 = vmatpush1.msra.mxu0 0.0
        %309 = vmatprep.subr.mxu0 0.0
        %310 = vmatpush1.msra.mxu0 0.0
        %311 = vmatprep.subr.mxu0 0.0
        %312 = vmatpush1.msra.mxu0 0.0
        %313 = vmatprep.subr.mxu0 0.0
        %314 = vmatpush1.msra.mxu0 0.0
        %315 = vmatprep.subr.mxu0 0.0
        %316 = vmatpush1.msra.mxu0 0.0
        %317 = vmatprep.subr.mxu0 0.0
        %318 = vmatpush1.msra.mxu0 0.0
        %319 = vmatprep.subr.mxu0 0.0
        %320 = vmatpush1.msra.mxu0 0.0
        %321 = vmatprep.subr.mxu0 0.0
        %322 = vmatpush1.msra.mxu0 0.0
        %323 = vmatprep.subr.mxu0 0.0
        %324 = vmatpush1.msra.mxu0 0.0
        %325 = vmatprep.subr.mxu0 0.0
        %326 = vmatpush1.msra.mxu0 0.0
        %327 = vmatprep.subr.mxu0 0.0
        %328 = vmatpush1.msra.mxu0 0.0
        %329 = vmatprep.subr.mxu0 0.0
        %330 = vmatpush1.msra.mxu0 0.0
        %331 = vmatprep.subr.mxu0 0.0
        %332 = vmatpush1.msra.mxu0 0.0
        %333 = vmatprep.subr.mxu0 0.0
        %334 = vmatpush1.msra.mxu0 0.0
        %335 = vmatprep.subr.mxu0 0.0
        %336 = vmatpush1.msra.mxu0 0.0
        %337 = vmatprep.subr.mxu0 0.0
        %338 = vmatpush1.msra.mxu0 0.0
        %339 = vmatprep.subr.mxu0 0.0
        %340 = vmatpush1.msra.mxu0 0.0
        %341 = vmatprep.subr.mxu0 0.0
        %342 = vmatpush1.msra.mxu0 0.0
        %343 = vmatprep.subr.mxu0 0.0
        %344 = vmatpush1.msra.mxu0 0.0
        %345 = vmatprep.mubr.f32.mxu0 0.0
        %346 = vmatmul.mubr.f32.gmra.mrb[0].mxu0 %v274
        %v347 = vpop.f32.mrb[0].mxu0
        %v348 = vadd.f32 %v268, %v347
        %v349 = vpop.f32.mrb[0].mxu0
        %v350 = vadd.f32 %v268, %v349
        %351 = vdwg.mxu0
        %v352 = vmul.f32 %v348, 0.5
        %v353 = vmul.f32 %v350, 0.5
        %v354 = vmul.f32 %v348, 0.70710677
        %v355 = vmul.f32 %v350, 0.70710677
        %v356 = verf.f32.pop %v354
        %v357 = verf.f32.pop %v355
        %v358 = vadd.f32 %v356, 1.0
        %v359 = vadd.f32 %v357, 1.0
        %v360 = vmul.f32 %v352, %v358
        %v361 = vmul.f32 %v353, %v359
        %363 = vset.pattern.permute.xlu0 0
        %364 = vperm.xlu0 %363, %v259
        %v365 = vpop.permute.xlu0 %364
        %v368 = vsel %vm272, %v255, 0
        %370 = vmatprep.subr.mxu0 %v279
        %371 = vmatpush1.msra.mxu0 %v277
        %372 = vmatprep.subr.mxu0 0.0
        %373 = vmatpush1.msra.mxu0 0.0
        %374 = vmatprep.subr.mxu0 0.0
        %375 = vmatpush1.msra.mxu0 0.0
        %376 = vmatprep.subr.mxu0 0.0
        %377 = vmatpush1.msra.mxu0 0.0
        %378 = vmatprep.subr.mxu0 0.0
        %379 = vmatpush1.msra.mxu0 0.0
        %380 = vmatprep.subr.mxu0 0.0
        %381 = vmatpush1.msra.mxu0 0.0
        %382 = vmatprep.subr.mxu0 0.0
        %383 = vmatpush1.msra.mxu0 0.0
        %384 = vmatprep.subr.mxu0 0.0
        %385 = vmatpush1.msra.mxu0 0.0
        %386 = vmatprep.subr.mxu0 0.0
        %387 = vmatpush1.msra.mxu0 0.0
        %388 = vmatprep.subr.mxu0 0.0
        %389 = vmatpush1.msra.mxu0 0.0
        %390 = vmatprep.subr.mxu0 0.0
        %391 = vmatpush1.msra.mxu0 0.0
        %392 = vmatprep.subr.mxu0 0.0
        %393 = vmatpush1.msra.mxu0 0.0
        %394 = vmatprep.subr.mxu0 0.0
        %395 = vmatpush1.msra.mxu0 0.0
        %396 = vmatprep.subr.mxu0 0.0
        %397 = vmatpush1.msra.mxu0 0.0
        %398 = vmatprep.subr.mxu0 0.0
        %399 = vmatpush1.msra.mxu0 0.0
        %400 = vmatprep.subr.mxu0 0.0
        %401 = vmatpush1.msra.mxu0 0.0
        %402 = vmatprep.subr.mxu0 0.0
        %403 = vmatpush1.msra.mxu0 0.0
        %404 = vmatprep.subr.mxu0 0.0
        %405 = vmatpush1.msra.mxu0 0.0
        %406 = vmatprep.subr.mxu0 0.0
        %407 = vmatpush1.msra.mxu0 0.0
        %408 = vmatprep.subr.mxu0 0.0
        %409 = vmatpush1.msra.mxu0 0.0
        %410 = vmatprep.subr.mxu0 0.0
        %411 = vmatpush1.msra.mxu0 0.0
        %412 = vmatprep.subr.mxu0 0.0
        %413 = vmatpush1.msra.mxu0 0.0
        %414 = vmatprep.subr.mxu0 0.0
        %415 = vmatpush1.msra.mxu0 0.0
        %416 = vmatprep.subr.mxu0 0.0
        %417 = vmatpush1.msra.mxu0 0.0
        %418 = vmatprep.subr.mxu0 0.0
        %419 = vmatpush1.msra.mxu0 0.0
        %420 = vmatprep.subr.mxu0 0.0
        %421 = vmatpush1.msra.mxu0 0.0
        %422 = vmatprep.subr.mxu0 0.0
        %423 = vmatpush1.msra.mxu0 0.0
        %424 = vmatprep.subr.mxu0 0.0
        %425 = vmatpush1.msra.mxu0 0.0
        %426 = vmatprep.subr.mxu0 0.0
        %427 = vmatpush1.msra.mxu0 0.0
        %428 = vmatprep.subr.mxu0 0.0
        %429 = vmatpush1.msra.mxu0 0.0
        %430 = vmatprep.subr.mxu0 0.0
        %431 = vmatpush1.msra.mxu0 0.0
        %432 = vmatprep.subr.mxu0 0.0
        %433 = vmatpush1.msra.mxu0 0.0
        %434 = vmatprep.mubr.f32.mxu0 0.0
        %435 = vmatmul.mubr.f32.gmra.mrb[0].mxu0 %v368
        %v436 = vpop.f32.mrb[0].mxu0
        %v437 = vadd.f32 %v365, %v436
        %v438 = vpop.f32.mrb[0].mxu0
        %v439 = vadd.f32 %v365, %v438
        %440 = vdwg.mxu0
        %v441 = vmul.f32 %v437, 0.5
        %v442 = vmul.f32 %v439, 0.5
        %v443 = vmul.f32 %v437, 0.70710677
        %v444 = vmul.f32 %v439, 0.70710677
        %v445 = verf.f32.pop %v443
        %v446 = verf.f32.pop %v444
        %v447 = vadd.f32 %v445, 1.0
        %v448 = vadd.f32 %v446, 1.0
        %v449 = vmul.f32 %v441, %v447
        %v450 = vmul.f32 %v442, %v448
        %452 = vrot.lane.b32.xlu0 %v262, 120
        %v453 = vpop.permute.xlu0 %452
        %vm454 = vcmask 64512
        %v455 = vsel %vm454, %v453, 0
        %457 = vmatprep.subr.mxu0 %v450
        %458 = vmatpush1.msra.mxu0 %v449
        %459 = vmatprep.subr.mxu0 0.0
        %460 = vmatpush1.msra.mxu0 0.0
        %461 = vmatprep.subr.mxu0 0.0
        %462 = vmatpush1.msra.mxu0 0.0
        %463 = vmatprep.subr.mxu0 0.0
        %464 = vmatpush1.msra.mxu0 0.0
        %465 = vmatprep.subr.mxu0 0.0
        %466 = vmatpush1.msra.mxu0 0.0
        %467 = vmatprep.subr.mxu0 0.0
        %468 = vmatpush1.msra.mxu0 0.0
        %469 = vmatprep.subr.mxu0 0.0
        %470 = vmatpush1.msra.mxu0 0.0
        %471 = vmatprep.subr.mxu0 0.0
        %472 = vmatpush1.msra.mxu0 0.0
        %473 = vmatprep.subr.mxu0 0.0
        %474 = vmatpush1.msra.mxu0 0.0
        %475 = vmatprep.subr.mxu0 0.0
        %476 = vmatpush1.msra.mxu0 0.0
        %477 = vmatprep.subr.mxu0 0.0
        %478 = vmatpush1.msra.mxu0 0.0
        %479 = vmatprep.subr.mxu0 0.0
        %480 = vmatpush1.msra.mxu0 0.0
        %481 = vmatprep.subr.mxu0 0.0
        %482 = vmatpush1.msra.mxu0 0.0
        %483 = vmatprep.subr.mxu0 0.0
        %484 = vmatpush1.msra.mxu0 0.0
        %485 = vmatprep.subr.mxu0 0.0
        %486 = vmatpush1.msra.mxu0 0.0
        %487 = vmatprep.subr.mxu0 0.0
        %488 = vmatpush1.msra.mxu0 0.0
        %489 = vmatprep.subr.mxu0 0.0
        %490 = vmatpush1.msra.mxu0 0.0
        %491 = vmatprep.subr.mxu0 0.0
        %492 = vmatpush1.msra.mxu0 0.0
        %493 = vmatprep.subr.mxu0 0.0
        %494 = vmatpush1.msra.mxu0 0.0
        %495 = vmatprep.subr.mxu0 0.0
        %496 = vmatpush1.msra.mxu0 0.0
        %497 = vmatprep.subr.mxu0 0.0
        %498 = vmatpush1.msra.mxu0 0.0
        %499 = vmatprep.subr.mxu0 0.0
        %500 = vmatpush1.msra.mxu0 0.0
        %501 = vmatprep.subr.mxu0 0.0
        %502 = vmatpush1.msra.mxu0 0.0
        %503 = vmatprep.subr.mxu0 0.0
        %504 = vmatpush1.msra.mxu0 0.0
        %505 = vmatprep.subr.mxu0 0.0
        %506 = vmatpush1.msra.mxu0 0.0
        %507 = vmatprep.subr.mxu0 0.0
        %508 = vmatpush1.msra.mxu0 0.0
        %509 = vmatprep.subr.mxu0 0.0
        %510 = vmatpush1.msra.mxu0 0.0
        %511 = vmatprep.subr.mxu0 0.0
        %512 = vmatpush1.msra.mxu0 0.0
        %513 = vmatprep.subr.mxu0 0.0
        %514 = vmatpush1.msra.mxu0 0.0
        %515 = vmatprep.subr.mxu0 0.0
        %516 = vmatpush1.msra.mxu0 0.0
        %517 = vmatprep.subr.mxu0 0.0
        %518 = vmatpush1.msra.mxu0 0.0
        %519 = vmatprep.subr.mxu0 0.0
        %520 = vmatpush1.msra.mxu0 0.0
        %521 = vmatprep.mubr.f32.mxu0 0.0
        %522 = vmatmul.mubr.f32.gmra.mrb[0].mxu0 %v455
        %v523 = vpop.f32.mrb[0].mxu0
        %v524 = vadd.f32 0.0, %v523
        %v525 = vpop.f32.mrb[0].mxu0
        %v526 = vadd.f32 0.0, %v525
        %527 = vdwg.mxu0
        %v528 = vsel %vm454, %v262, 0
        %530 = vmatprep.subr.mxu0 %v361
        %531 = vmatpush1.msra.mxu0 %v360
        %532 = vmatprep.subr.mxu0 0.0
        %533 = vmatpush1.msra.mxu0 0.0
        %534 = vmatprep.subr.mxu0 0.0
        %535 = vmatpush1.msra.mxu0 0.0
        %536 = vmatprep.subr.mxu0 0.0
        %537 = vmatpush1.msra.mxu0 0.0
        %538 = vmatprep.subr.mxu0 0.0
        %539 = vmatpush1.msra.mxu0 0.0
        %540 = vmatprep.subr.mxu0 0.0
        %541 = vmatpush1.msra.mxu0 0.0
        %542 = vmatprep.subr.mxu0 0.0
        %543 = vmatpush1.msra.mxu0 0.0
        %544 = vmatprep.subr.mxu0 0.0
        %545 = vmatpush1.msra.mxu0 0.0
        %546 = vmatprep.subr.mxu0 0.0
        %547 = vmatpush1.msra.mxu0 0.0
        %548 = vmatprep.subr.mxu0 0.0
        %549 = vmatpush1.msra.mxu0 0.0
        %550 = vmatprep.subr.mxu0 0.0
        %551 = vmatpush1.msra.mxu0 0.0
        %552 = vmatprep.subr.mxu0 0.0
        %553 = vmatpush1.msra.mxu0 0.0
        %554 = vmatprep.subr.mxu0 0.0
        %555 = vmatpush1.msra.mxu0 0.0
        %556 = vmatprep.subr.mxu0 0.0
        %557 = vmatpush1.msra.mxu0 0.0
        %558 = vmatprep.subr.mxu0 0.0
        %559 = vmatpush1.msra.mxu0 0.0
        %560 = vmatprep.subr.mxu0 0.0
        %561 = vmatpush1.msra.mxu0 0.0
        %562 = vmatprep.subr.mxu0 0.0
        %563 = vmatpush1.msra.mxu0 0.0
        %564 = vmatprep.subr.mxu0 0.0
        %565 = vmatpush1.msra.mxu0 0.0
        %566 = vmatprep.subr.mxu0 0.0
        %567 = vmatpush1.msra.mxu0 0.0
        %568 = vmatprep.subr.mxu0 0.0
        %569 = vmatpush1.msra.mxu0 0.0
        %570 = vmatprep.subr.mxu0 0.0
        %571 = vmatpush1.msra.mxu0 0.0
        %572 = vmatprep.subr.mxu0 0.0
        %573 = vmatpush1.msra.mxu0 0.0
        %574 = vmatprep.subr.mxu0 0.0
        %575 = vmatpush1.msra.mxu0 0.0
        %576 = vmatprep.subr.mxu0 0.0
        %577 = vmatpush1.msra.mxu0 0.0
        %578 = vmatprep.subr.mxu0 0.0
        %579 = vmatpush1.msra.mxu0 0.0
        %580 = vmatprep.subr.mxu0 0.0
        %581 = vmatpush1.msra.mxu0 0.0
        %582 = vmatprep.subr.mxu0 0.0
        %583 = vmatpush1.msra.mxu0 0.0
        %584 = vmatprep.subr.mxu0 0.0
        %585 = vmatpush1.msra.mxu0 0.0
        %586 = vmatprep.subr.mxu0 0.0
        %587 = vmatpush1.msra.mxu0 0.0
        %588 = vmatprep.subr.mxu0 0.0
        %589 = vmatpush1.msra.mxu0 0.0
        %590 = vmatprep.subr.mxu0 0.0
        %591 = vmatpush1.msra.mxu0 0.0
        %592 = vmatprep.subr.mxu0 0.0
        %593 = vmatpush1.msra.mxu0 0.0
        %594 = vmatprep.mubr.f32.mxu0 0.0
        %595 = vmatmul.mubr.f32.gmra.mrb[0].mxu0 %v528
        %v596 = vpop.f32.mrb[0].mxu0
        %v597 = vadd.f32 %v524, %v596
        %v598 = vpop.f32.mrb[0].mxu0
        %v599 = vadd.f32 %v526, %v598
        %600 = vdwg.mxu0
        %602 = vset.pattern.permute.xlu0 0
        %603 = vperm.xlu0 %602, %v260
        %v604 = vpop.permute.xlu0 %603
        %v607 = vsel %vm272, %v256, 0
        %609 = vmatprep.subr.mxu0 %v279
        %610 = vmatpush1.msra.mxu0 %v277
        %611 = vmatprep.subr.mxu0 0.0
        %612 = vmatpush1.msra.mxu0 0.0
        %613 = vmatprep.subr.mxu0 0.0
        %614 = vmatpush1.msra.mxu0 0.0
        %615 = vmatprep.subr.mxu0 0.0
        %616 = vmatpush1.msra.mxu0 0.0
        %617 = vmatprep.subr.mxu0 0.0
        %618 = vmatpush1.msra.mxu0 0.0
        %619 = vmatprep.subr.mxu0 0.0
        %620 = vmatpush1.msra.mxu0 0.0
        %621 = vmatprep.subr.mxu0 0.0
        %622 = vmatpush1.msra.mxu0 0.0
        %623 = vmatprep.subr.mxu0 0.0
        %624 = vmatpush1.msra.mxu0 0.0
        %625 = vmatprep.subr.mxu0 0.0
        %626 = vmatpush1.msra.mxu0 0.0
        %627 = vmatprep.subr.mxu0 0.0
        %628 = vmatpush1.msra.mxu0 0.0
        %629 = vmatprep.subr.mxu0 0.0
        %630 = vmatpush1.msra.mxu0 0.0
        %631 = vmatprep.subr.mxu0 0.0
        %632 = vmatpush1.msra.mxu0 0.0
        %633 = vmatprep.subr.mxu0 0.0
        %634 = vmatpush1.msra.mxu0 0.0
        %635 = vmatprep.subr.mxu0 0.0
        %636 = vmatpush1.msra.mxu0 0.0
        %637 = vmatprep.subr.mxu0 0.0
        %638 = vmatpush1.msra.mxu0 0.0
        %639 = vmatprep.subr.mxu0 0.0
        %640 = vmatpush1.msra.mxu0 0.0
        %641 = vmatprep.subr.mxu0 0.0
        %642 = vmatpush1.msra.mxu0 0.0
        %643 = vmatprep.subr.mxu0 0.0
        %644 = vmatpush1.msra.mxu0 0.0
        %645 = vmatprep.subr.mxu0 0.0
        %646 = vmatpush1.msra.mxu0 0.0
        %647 = vmatprep.subr.mxu0 0.0
        %648 = vmatpush1.msra.mxu0 0.0
        %649 = vmatprep.subr.mxu0 0.0
        %650 = vmatpush1.msra.mxu0 0.0
        %651 = vmatprep.subr.mxu0 0.0
        %652 = vmatpush1.msra.mxu0 0.0
        %653 = vmatprep.subr.mxu0 0.0
        %654 = vmatpush1.msra.mxu0 0.0
        %655 = vmatprep.subr.mxu0 0.0
        %656 = vmatpush1.msra.mxu0 0.0
        %657 = vmatprep.subr.mxu0 0.0
        %658 = vmatpush1.msra.mxu0 0.0
        %659 = vmatprep.subr.mxu0 0.0
        %660 = vmatpush1.msra.mxu0 0.0
        %661 = vmatprep.subr.mxu0 0.0
        %662 = vmatpush1.msra.mxu0 0.0
        %663 = vmatprep.subr.mxu0 0.0
        %664 = vmatpush1.msra.mxu0 0.0
        %665 = vmatprep.subr.mxu0 0.0
        %666 = vmatpush1.msra.mxu0 0.0
        %667 = vmatprep.subr.mxu0 0.0
        %668 = vmatpush1.msra.mxu0 0.0
        %669 = vmatprep.subr.mxu0 0.0
        %670 = vmatpush1.msra.mxu0 0.0
        %671 = vmatprep.subr.mxu0 0.0
        %672 = vmatpush1.msra.mxu0 0.0
        %673 = vmatprep.mubr.f32.mxu0 0.0
        %674 = vmatmul.mubr.f32.gmra.mrb[0].mxu0 %v607
        %v675 = vpop.f32.mrb[0].mxu0
        %v676 = vadd.f32 %v604, %v675
        %v677 = vpop.f32.mrb[0].mxu0
        %v678 = vadd.f32 %v604, %v677
        %679 = vdwg.mxu0
        %v680 = vmul.f32 %v676, 0.5
        %v681 = vmul.f32 %v678, 0.5
        %v682 = vmul.f32 %v676, 0.70710677
        %v683 = vmul.f32 %v678, 0.70710677
        %v684 = verf.f32.pop %v682
        %v685 = verf.f32.pop %v683
        %v686 = vadd.f32 %v684, 1.0
        %v687 = vadd.f32 %v685, 1.0
        %v688 = vmul.f32 %v680, %v686
        %v689 = vmul.f32 %v681, %v687
        %690 = vrot.lane.b32.xlu0 %v262, 112
        %v691 = vpop.permute.xlu0 %690
        %v692 = vsel %vm454, %v691, 0
        %694 = vmatprep.subr.mxu0 %v689
        %695 = vmatpush1.msra.mxu0 %v688
        %696 = vmatprep.subr.mxu0 0.0
        %697 = vmatpush1.msra.mxu0 0.0
        %698 = vmatprep.subr.mxu0 0.0
        %699 = vmatpush1.msra.mxu0 0.0
        %700 = vmatprep.subr.mxu0 0.0
        %701 = vmatpush1.msra.mxu0 0.0
        %702 = vmatprep.subr.mxu0 0.0
        %703 = vmatpush1.msra.mxu0 0.0
        %704 = vmatprep.subr.mxu0 0.0
        %705 = vmatpush1.msra.mxu0 0.0
        %706 = vmatprep.subr.mxu0 0.0
        %707 = vmatpush1.msra.mxu0 0.0
        %708 = vmatprep.subr.mxu0 0.0
        %709 = vmatpush1.msra.mxu0 0.0
        %710 = vmatprep.subr.mxu0 0.0
        %711 = vmatpush1.msra.mxu0 0.0
        %712 = vmatprep.subr.mxu0 0.0
        %713 = vmatpush1.msra.mxu0 0.0
        %714 = vmatprep.subr.mxu0 0.0
        %715 = vmatpush1.msra.mxu0 0.0
        %716 = vmatprep.subr.mxu0 0.0
        %717 = vmatpush1.msra.mxu0 0.0
        %718 = vmatprep.subr.mxu0 0.0
        %719 = vmatpush1.msra.mxu0 0.0
        %720 = vmatprep.subr.mxu0 0.0
        %721 = vmatpush1.msra.mxu0 0.0
        %722 = vmatprep.subr.mxu0 0.0
        %723 = vmatpush1.msra.mxu0 0.0
        %724 = vmatprep.subr.mxu0 0.0
        %725 = vmatpush1.msra.mxu0 0.0
        %726 = vmatprep.subr.mxu0 0.0
        %727 = vmatpush1.msra.mxu0 0.0
        %728 = vmatprep.subr.mxu0 0.0
        %729 = vmatpush1.msra.mxu0 0.0
        %730 = vmatprep.subr.mxu0 0.0
        %731 = vmatpush1.msra.mxu0 0.0
        %732 = vmatprep.subr.mxu0 0.0
        %733 = vmatpush1.msra.mxu0 0.0
        %734 = vmatprep.subr.mxu0 0.0
        %735 = vmatpush1.msra.mxu0 0.0
        %736 = vmatprep.subr.mxu0 0.0
        %737 = vmatpush1.msra.mxu0 0.0
        %738 = vmatprep.subr.mxu0 0.0
        %739 = vmatpush1.msra.mxu0 0.0
        %740 = vmatprep.subr.mxu0 0.0
        %741 = vmatpush1.msra.mxu0 0.0
        %742 = vmatprep.subr.mxu0 0.0
        %743 = vmatpush1.msra.mxu0 0.0
        %744 = vmatprep.subr.mxu0 0.0
        %745 = vmatpush1.msra.mxu0 0.0
        %746 = vmatprep.subr.mxu0 0.0
        %747 = vmatpush1.msra.mxu0 0.0
        %748 = vmatprep.subr.mxu0 0.0
        %749 = vmatpush1.msra.mxu0 0.0
        %750 = vmatprep.subr.mxu0 0.0
        %751 = vmatpush1.msra.mxu0 0.0
        %752 = vmatprep.subr.mxu0 0.0
        %753 = vmatpush1.msra.mxu0 0.0
        %754 = vmatprep.subr.mxu0 0.0
        %755 = vmatpush1.msra.mxu0 0.0
        %756 = vmatprep.subr.mxu0 0.0
        %757 = vmatpush1.msra.mxu0 0.0
        %758 = vmatprep.mubr.f32.mxu0 0.0
        %759 = vmatmul.mubr.f32.gmra.mrb[0].mxu0 %v692
        %v760 = vpop.f32.mrb[0].mxu0
        %v761 = vadd.f32 0.0, %v760
        %v762 = vpop.f32.mrb[0].mxu0
        %v763 = vadd.f32 0.0, %v762
        %764 = vdwg.mxu0
        %v765 = vadd.f32 %v597, %v761
        %v766 = vadd.f32 %v599, %v763
        %768 = vset.pattern.permute.xlu0 0
        %769 = vperm.xlu0 %768, %v261
        %v770 = vpop.permute.xlu0 %769
        %v773 = vsel %vm272, %v257, 0
        %775 = vmatprep.subr.mxu0 %v279
        %776 = vmatpush1.msra.mxu0 %v277
        %777 = vmatprep.subr.mxu0 0.0
        %778 = vmatpush1.msra.mxu0 0.0
        %779 = vmatprep.subr.mxu0 0.0
        %780 = vmatpush1.msra.mxu0 0.0
        %781 = vmatprep.subr.mxu0 0.0
        %782 = vmatpush1.msra.mxu0 0.0
        %783 = vmatprep.subr.mxu0 0.0
        %784 = vmatpush1.msra.mxu0 0.0
        %785 = vmatprep.subr.mxu0 0.0
        %786 = vmatpush1.msra.mxu0 0.0
        %787 = vmatprep.subr.mxu0 0.0
        %788 = vmatpush1.msra.mxu0 0.0
        %789 = vmatprep.subr.mxu0 0.0
        %790 = vmatpush1.msra.mxu0 0.0
        %791 = vmatprep.subr.mxu0 0.0
        %792 = vmatpush1.msra.mxu0 0.0
        %793 = vmatprep.subr.mxu0 0.0
        %794 = vmatpush1.msra.mxu0 0.0
        %795 = vmatprep.subr.mxu0 0.0
        %796 = vmatpush1.msra.mxu0 0.0
        %797 = vmatprep.subr.mxu0 0.0
        %798 = vmatpush1.msra.mxu0 0.0
        %799 = vmatprep.subr.mxu0 0.0
        %800 = vmatpush1.msra.mxu0 0.0
        %801 = vmatprep.subr.mxu0 0.0
        %802 = vmatpush1.msra.mxu0 0.0
        %803 = vmatprep.subr.mxu0 0.0
        %804 = vmatpush1.msra.mxu0 0.0
        %805 = vmatprep.subr.mxu0 0.0
        %806 = vmatpush1.msra.mxu0 0.0
        %807 = vmatprep.subr.mxu0 0.0
        %808 = vmatpush1.msra.mxu0 0.0
        %809 = vmatprep.subr.mxu0 0.0
        %810 = vmatpush1.msra.mxu0 0.0
        %811 = vmatprep.subr.mxu0 0.0
        %812 = vmatpush1.msra.mxu0 0.0
        %813 = vmatprep.subr.mxu0 0.0
        %814 = vmatpush1.msra.mxu0 0.0
        %815 = vmatprep.subr.mxu0 0.0
        %816 = vmatpush1.msra.mxu0 0.0
        %817 = vmatprep.subr.mxu0 0.0
        %818 = vmatpush1.msra.mxu0 0.0
        %819 = vmatprep.subr.mxu0 0.0
        %820 = vmatpush1.msra.mxu0 0.0
        %821 = vmatprep.subr.mxu0 0.0
        %822 = vmatpush1.msra.mxu0 0.0
        %823 = vmatprep.subr.mxu0 0.0
        %824 = vmatpush1.msra.mxu0 0.0
        %825 = vmatprep.subr.mxu0 0.0
        %826 = vmatpush1.msra.mxu0 0.0
        %827 = vmatprep.subr.mxu0 0.0
        %828 = vmatpush1.msra.mxu0 0.0
        %829 = vmatprep.subr.mxu0 0.0
        %830 = vmatpush1.msra.mxu0 0.0
        %831 = vmatprep.subr.mxu0 0.0
        %832 = vmatpush1.msra.mxu0 0.0
        %833 = vmatprep.subr.mxu0 0.0
        %834 = vmatpush1.msra.mxu0 0.0
        %835 = vmatprep.subr.mxu0 0.0
        %836 = vmatpush1.msra.mxu0 0.0
        %837 = vmatprep.subr.mxu0 0.0
        %838 = vmatpush1.msra.mxu0 0.0
        %839 = vmatprep.mubr.f32.mxu0 0.0
        %840 = vmatmul.mubr.f32.gmra.mrb[0].mxu0 %v773
        %v841 = vpop.f32.mrb[0].mxu0
        %v842 = vadd.f32 %v770, %v841
        %v843 = vpop.f32.mrb[0].mxu0
        %v844 = vadd.f32 %v770, %v843
        %845 = vdwg.mxu0
        %v846 = vmul.f32 %v842, 0.5
        %v847 = vmul.f32 %v844, 0.5
        %v848 = vmul.f32 %v842, 0.70710677
        %v849 = vmul.f32 %v844, 0.70710677
        %v850 = verf.f32.pop %v848
        %v851 = verf.f32.pop %v849
        %v852 = vadd.f32 %v850, 1.0
        %v853 = vadd.f32 %v851, 1.0
        %v854 = vmul.f32 %v846, %v852
        %v855 = vmul.f32 %v847, %v853
        %856 = vrot.lane.b32.xlu0 %v262, 104
        %v857 = vpop.permute.xlu0 %856
        %v858 = vsel %vm454, %v857, 0
        %860 = vmatprep.subr.mxu0 %v855
        %861 = vmatpush1.msra.mxu0 %v854
        %862 = vmatprep.subr.mxu0 0.0
        %863 = vmatpush1.msra.mxu0 0.0
        %864 = vmatprep.subr.mxu0 0.0
        %865 = vmatpush1.msra.mxu0 0.0
        %866 = vmatprep.subr.mxu0 0.0
        %867 = vmatpush1.msra.mxu0 0.0
        %868 = vmatprep.subr.mxu0 0.0
        %869 = vmatpush1.msra.mxu0 0.0
        %870 = vmatprep.subr.mxu0 0.0
        %871 = vmatpush1.msra.mxu0 0.0
        %872 = vmatprep.subr.mxu0 0.0
        %873 = vmatpush1.msra.mxu0 0.0
        %874 = vmatprep.subr.mxu0 0.0
        %875 = vmatpush1.msra.mxu0 0.0
        %876 = vmatprep.subr.mxu0 0.0
        %877 = vmatpush1.msra.mxu0 0.0
        %878 = vmatprep.subr.mxu0 0.0
        %879 = vmatpush1.msra.mxu0 0.0
        %880 = vmatprep.subr.mxu0 0.0
        %881 = vmatpush1.msra.mxu0 0.0
        %882 = vmatprep.subr.mxu0 0.0
        %883 = vmatpush1.msra.mxu0 0.0
        %884 = vmatprep.subr.mxu0 0.0
        %885 = vmatpush1.msra.mxu0 0.0
        %886 = vmatprep.subr.mxu0 0.0
        %887 = vmatpush1.msra.mxu0 0.0
        %888 = vmatprep.subr.mxu0 0.0
        %889 = vmatpush1.msra.mxu0 0.0
        %890 = vmatprep.subr.mxu0 0.0
        %891 = vmatpush1.msra.mxu0 0.0
        %892 = vmatprep.subr.mxu0 0.0
        %893 = vmatpush1.msra.mxu0 0.0
        %894 = vmatprep.subr.mxu0 0.0
        %895 = vmatpush1.msra.mxu0 0.0
        %896 = vmatprep.subr.mxu0 0.0
        %897 = vmatpush1.msra.mxu0 0.0
        %898 = vmatprep.subr.mxu0 0.0
        %899 = vmatpush1.msra.mxu0 0.0
        %900 = vmatprep.subr.mxu0 0.0
        %901 = vmatpush1.msra.mxu0 0.0
        %902 = vmatprep.subr.mxu0 0.0
        %903 = vmatpush1.msra.mxu0 0.0
        %904 = vmatprep.subr.mxu0 0.0
        %905 = vmatpush1.msra.mxu0 0.0
        %906 = vmatprep.subr.mxu0 0.0
        %907 = vmatpush1.msra.mxu0 0.0
        %908 = vmatprep.subr.mxu0 0.0
        %909 = vmatpush1.msra.mxu0 0.0
        %910 = vmatprep.subr.mxu0 0.0
        %911 = vmatpush1.msra.mxu0 0.0
        %912 = vmatprep.subr.mxu0 0.0
        %913 = vmatpush1.msra.mxu0 0.0
        %914 = vmatprep.subr.mxu0 0.0
        %915 = vmatpush1.msra.mxu0 0.0
        %916 = vmatprep.subr.mxu0 0.0
        %917 = vmatpush1.msra.mxu0 0.0
        %918 = vmatprep.subr.mxu0 0.0
        %919 = vmatpush1.msra.mxu0 0.0
        %920 = vmatprep.subr.mxu0 0.0
        %921 = vmatpush1.msra.mxu0 0.0
        %922 = vmatprep.subr.mxu0 0.0
        %923 = vmatpush1.msra.mxu0 0.0
        %924 = vmatprep.mubr.f32.mxu0 0.0
        %925 = vmatmul.mubr.f32.gmra.mrb[0].mxu0 %v858
        %v926 = vpop.f32.mrb[0].mxu0
        %v927 = vadd.f32 0.0, %v926
        %v928 = vpop.f32.mrb[0].mxu0
        %v929 = vadd.f32 0.0, %v928
        %930 = vdwg.mxu0
        %v931 = vadd.f32 %v765, %v927
        %v932 = vadd.f32 %v766, %v929
        %934 = vset.pattern.permute.xlu0 0
        %935 = vperm.xlu0 %934, %v263
        %v936 = vpop.permute.xlu0 %935
        %v938 = vadd.f32 %v931, %v936
        %v939 = vadd.f32 %v932, %v936
        %v942 = vcombine.low %v938, %v939
        %944 = vst [vmem:[%s242] sm:$0xff] %v942
        %s945 = sand.u32 %s153, 1
        %s946 = scalar_lea.sflag [#allocation3], %s945
        %s947 = sand.u32 %s153, 1
        %s948 = smul.addr %s947, 8
        %s949 = scalar_lea.vmem [#allocation2], %s948
        // Predicated region
        $region41: #{_mlp_channels_first.1} parent=39 // pred_check
          %p950 = pneg %p163
        $region42: #{_mlp_channels_first.1} parent=39 // pred_check_branch
          %952 = sbr.rel (%p950) target = $region44
        $region43: #{_mlp_channels_first.1} parent=39 // pred_region
          %s953 = smul.u32 2, %s24
          %s955 = ssub.s32 128, 128
          %956 = vsyncadd %s946, %s955
          %s957 = smul.addr %s23, 2
          %s958 = sadd.s32 %s953, %s957
          %s959 = smul.addr %s958, 64
          %s960 = scalar_lea.hbm %s5, %s959
          %s962 = sshll.u32 %s949, 4
          %s963 = int_to_ptr.vmem [resolvable:$true] %s962
          %965 = dma.vmem_to_hbm [thread:$0]  %s963, 128, %s960, %s946
        $region44: #{_mlp_channels_first.1} parent=39 // pred_fallthru
          _
      $region40: #{_mlp_channels_first.1} parent=5 // pred_fallthru
        _
      %p966 = scmp.le.s32.totalorder 2, %s14
      // Predicated region
      $region45: #{_mlp_channels_first.1} parent=5 // pred_check
        %p967 = pneg %p966
      $region46: #{_mlp_channels_first.1} parent=5 // pred_check_branch
        %969 = sbr.rel (%p967) target = $region48
      $region47: #{_mlp_channels_first.1} parent=5 // pred_region
        %s970 = ssub.s32 %s14, 2
        // Predicated region
        $region49: #{_mlp_channels_first.1} parent=47 // pred_check
          %p971 = pneg %p169
        $region50: #{_mlp_channels_first.1} parent=47 // pred_check_branch
          %973 = sbr.rel (%p971) target = $region52
        $region51: #{_mlp_channels_first.1} parent=47 // pred_region
          %s974 = sand.u32 %s154, 1
          %s975 = scalar_lea.sflag [#allocation3], %s974
          %s976 = sand.u32 %s154, 1
          %s977 = smul.addr %s976, 8
          %s978 = scalar_lea.vmem [#allocation2], %s977
          %979 = dma.done %s975, 128
        $region52: #{_mlp_channels_first.1} parent=47 // pred_fallthru
          _
      $region48: #{_mlp_channels_first.1} parent=5 // pred_fallthru
        _
    $region6: #{_mlp_channels_first.1} parent=1 // loop_footer
      %s18 = sadd.s32 1, %s14
    $region7: #{_mlp_channels_first.1} parent=1 // loop_footer_branch
      %13 = sbr.rel target = $region3
    $region8: #{_mlp_channels_first.1} parent=1 // loop_exit
      _
    %980 = vsyncpa [#allocation3], 1
    %s981 = scalar_lea.sflag [#allocation3], 1
    %982 = vsyncpa %s981, 1

</llo_original>
